<compile_context>
chip_gen: v5e
topology: v5e:2x2
jax: 0.10.0
libtpu: 0.0.40
codegen_flags: <defaults>
</compile_context>

<pallas_src>
import jax
import jax.numpy as jnp
from jax.experimental import pallas as pl
from jax.experimental.pallas import tpu as pltpu


def linear_kernel(x_ref, wt_ref, b_ref, o_ref):
    # x_ref: (TM, IN), wt_ref: (IN, OUT), b_ref: (1, OUT), o_ref: (TM, OUT)
    o_ref[...] = (
        jnp.dot(x_ref[...], wt_ref[...], preferred_element_type=jnp.float32)
        + b_ref[...]
    ).astype(o_ref.dtype)


def _round_up(x, m):
    return (x + m - 1) // m * m


def one_one_nn_forward(x, w, b, *, tile_m=1024):
    """Forward pass of OneOneNeuralNetwork.

    x: (B, 100) float32
    w: (2, 100) float32  (PyTorch nn.Linear weight layout: (out, in))
    b: (2,)     float32
    returns: (B, 2) float32
    """
    B, in_dim = x.shape
    out_dim = w.shape[0]

    # Glue in plain JAX: transpose weight once, reshape bias for broadcast.
    wt = w.T.astype(x.dtype)                 # (IN, OUT)
    b2 = b.reshape(1, out_dim).astype(jnp.float32)

    # Batch tile: multiple of 8 sublanes, capped at tile_m rows.
    tm = min(tile_m, _round_up(B, 8))
    padded_B = _round_up(B, tm)
    if padded_B != B:
        x = jnp.pad(x, ((0, padded_B - B), (0, 0)))

    grid = (padded_B // tm,)

    itemsize = jnp.dtype(x.dtype).itemsize
    flops = 2 * padded_B * in_dim * out_dim
    bytes_accessed = (
        padded_B * in_dim * itemsize      # stream x
        + in_dim * out_dim * itemsize     # weight (resident)
        + padded_B * out_dim * 4          # output f32
    )

    out = pl.pallas_call(
        linear_kernel,
        out_shape=jax.ShapeDtypeStruct((padded_B, out_dim), jnp.float32),
        grid_spec=pltpu.PrefetchScalarGridSpec(
            num_scalar_prefetch=0,
            grid=grid,
            in_specs=[
                pl.BlockSpec((tm, in_dim), lambda i: (i, 0)),        # x tile
                pl.BlockSpec((in_dim, out_dim), lambda i: (0, 0)),   # W.T resident
                pl.BlockSpec((1, out_dim), lambda i: (0, 0)),        # bias resident
            ],
            out_specs=pl.BlockSpec((tm, out_dim), lambda i: (i, 0)),
        ),
        compiler_params=pltpu.CompilerParams(
            dimension_semantics=("parallel",),   # v7x: shard batch across 2 TCs
        ),
        cost_estimate=pl.CostEstimate(
            flops=flops, transcendentals=0, bytes_accessed=bytes_accessed
        ),
    )(x, wt, b2)

    return out[:B] if padded_B != B else out


if __name__ == "__main__":
    key = jax.random.PRNGKey(0)
    k_x, k_w, k_b, k_x2 = jax.random.split(key, 4)

    B, IN, OUT = 8, 100, 2

    # Deterministic parameter init mimicking PyTorch's nn.Linear default:
    # uniform(-1/sqrt(in_features), 1/sqrt(in_features))
    bound = 1.0 / jnp.sqrt(jnp.float32(IN))
    w = jax.random.uniform(k_w, (OUT, IN), jnp.float32, -bound, bound)
    b = jax.random.uniform(k_b, (OUT,), jnp.float32, -bound, bound)

    # Small case (single tile, no padding beyond sublane rounding).
    x = jax.random.normal(k_x, (B, IN), jnp.float32)
    out = jax.block_until_ready(one_one_nn_forward(x, w, b))
    ref = x @ w.T + b
    assert out.shape == (B, OUT)
    assert jnp.allclose(out, ref, atol=1e-5, rtol=1e-5)

    # Larger, non-multiple-of-tile case to exercise the tiled/pipelined path.
    B2 = 2050
    x2 = jax.random.normal(k_x2, (B2, IN), jnp.float32)
    out2 = jax.block_until_ready(one_one_nn_forward(x2, w, b))
    ref2 = x2 @ w.T + b
    assert out2.shape == (B2, OUT)
    assert jnp.allclose(out2, ref2, atol=1e-5, rtol=1e-5)

    print("KERNEL_OK")
</pallas_src>

<mosaic_0001>
module attributes {stable_mosaic.version = 11 : i64} {
  func.func @linear_kernel(%arg0: i32, %arg1: memref<8x100xf32, #tpu.memory_space<vmem>>, %arg2: memref<100x2xf32, #tpu.memory_space<vmem>>, %arg3: memref<1x2xf32, #tpu.memory_space<vmem>>, %arg4: memref<8x2xf32, #tpu.memory_space<vmem>>) attributes {dimension_semantics = [#tpu.dimension_semantics<parallel>], iteration_bounds = array<i64: 1>, scalar_prefetch = 0 : i64, scratch_operands = 0 : i64, tpu.core_type = #tpu.core_type<tc>, window_params = [{transform_indices = @transform_0, window_bounds = array<i64: 8, 100>}, {pipeline_mode = #tpu.pipeline_mode<synchronous>, transform_indices = @transform_1, window_bounds = array<i64: 100, 2>}, {pipeline_mode = #tpu.pipeline_mode<synchronous>, transform_indices = @transform_2, window_bounds = array<i64: 1, 2>}, {transform_indices = @transform_3, window_bounds = array<i64: 8, 2>}]} {
    %c0 = arith.constant 0 : index
    %c0_0 = arith.constant 0 : index
    %0 = vector.load %arg1[%c0, %c0_0] : memref<8x100xf32, #tpu.memory_space<vmem>>, vector<8x100xf32>
    %c0_1 = arith.constant 0 : index
    %c0_2 = arith.constant 0 : index
    %1 = vector.load %arg2[%c0_1, %c0_2] : memref<100x2xf32, #tpu.memory_space<vmem>>, vector<100x2xf32>
    %cst = arith.constant dense<0.000000e+00> : vector<8x2xf32>
    %2 = tpu.matmul %0, %1, %cst {dimension_numbers = #tpu.dot_dimension_numbers<[1], [0], [0], [1], [0, 0, 1, 1], [], []>} : vector<8x100xf32>, vector<100x2xf32>, vector<8x2xf32> -> vector<8x2xf32>
    %c0_3 = arith.constant 0 : index
    %c0_4 = arith.constant 0 : index
    %3 = vector.load %arg3[%c0_3, %c0_4] : memref<1x2xf32, #tpu.memory_space<vmem>>, vector<1x2xf32>
    %4 = vector.broadcast %3 : vector<1x2xf32> to vector<8x2xf32>
    %5 = arith.addf %2, %4 : vector<8x2xf32>
    %c0_5 = arith.constant 0 : index
    %c0_6 = arith.constant 0 : index
    %6 = vector.load %arg4[%c0_5, %c0_6] : memref<8x2xf32, #tpu.memory_space<vmem>>, vector<8x2xf32>
    tpu.vector_store %arg4[%c0_5, %c0_6], %5 {strides = array<i32>} : memref<8x2xf32, #tpu.memory_space<vmem>>, vector<8x2xf32>,
    return
  }
  func.func @transform_0(%arg0: i32) -> (i32, i32) {
    %c0_i32 = arith.constant 0 : i32
    %c0_i32_0 = arith.constant 0 : i32
    return %arg0, %c0_i32 : i32, i32
  }
  func.func @transform_1(%arg0: i32) -> (i32, i32) {
    %c0_i32 = arith.constant 0 : i32
    %c0_i32_0 = arith.constant 0 : i32
    %c0_i32_1 = arith.constant 0 : i32
    return %c0_i32, %c0_i32_0 : i32, i32
  }
  func.func @transform_2(%arg0: i32) -> (i32, i32) {
    %c0_i32 = arith.constant 0 : i32
    %c0_i32_0 = arith.constant 0 : i32
    %c0_i32_1 = arith.constant 0 : i32
    return %c0_i32, %c0_i32_0 : i32, i32
  }
  func.func @transform_3(%arg0: i32) -> (i32, i32) {
    %c0_i32 = arith.constant 0 : i32
    %c0_i32_0 = arith.constant 0 : i32
    return %arg0, %c0_i32 : i32, i32
  }
}

</mosaic_0001>

<llo_original>
// kernel: tpu_custom_call.1
$region0: #{tpu_custom_call.1}
  #allocation0 [shape = 'u32[]', space=smem, size = 0x4, offset = 0x4, fixed_abs, tag = 'smem constant byte address 0x4 - core index']
  #allocation1 [shape = 'u32[72,128]{1,0:T(1,128)}', space=vmem, size = 0x9000, scoped, tag = 'internal scratch']
  %s0 = inlined_call_operand.vmem [shape: f32[8,100], index: 0, kind: input, shape index: {}]
  %s1 = inlined_call_operand.vmem [shape: f32[100,2], index: 1, kind: input, shape index: {}]
  %s2 = inlined_call_operand.vmem [shape: f32[1,2], index: 2, kind: input, shape index: {}]
  %s3 = inlined_call_operand.vmem [shape: f32[8,2], index: 3, kind: output, shape index: {}]
  %s4 = sld [smem:[#allocation0]]
  $region22: #{tpu_custom_call.1} parent=0
    _
  %s6 = ssub.s32 1, %s4
  %s7 = scalar_select 0, %s6, %s4
  // Predicated region
  $region2: #{tpu_custom_call.1} parent=0 // pred_check
    _
  $region3: #{tpu_custom_call.1} parent=0 // pred_check_branch
    %9 = sbr.rel (0) target = $region5
  $region4: #{tpu_custom_call.1} parent=0 // pred_region
    _
  $region5: #{tpu_custom_call.1} parent=0 // pred_fallthru
    _
  // Predicated region
  $region6: #{tpu_custom_call.1} parent=0 // pred_check
    _
  $region7: #{tpu_custom_call.1} parent=0 // pred_check_branch
    %11 = sbr.rel (0) target = $region9
  $region8: #{tpu_custom_call.1} parent=0 // pred_region
    _
  $region9: #{tpu_custom_call.1} parent=0 // pred_fallthru
    _
  // Predicated region
  $region10: #{tpu_custom_call.1} parent=0 // pred_check
    _
  $region11: #{tpu_custom_call.1} parent=0 // pred_check_branch
    %13 = sbr.rel (0) target = $region13
  $region12: #{tpu_custom_call.1} parent=0 // pred_region
    _
  $region13: #{tpu_custom_call.1} parent=0 // pred_fallthru
    _
  %v14 = vld [vmem:[%s0] sm:$0xff]
  %v15 = vld [vmem:[%s1] sm:$0xff]
  %v16 = vld [vmem:[%s1 + $0x8] sm:$0xff]
  %v17 = vld [vmem:[%s1 + $0x10] sm:$0xff]
  %v18 = vld [vmem:[%s1 + $0x18] sm:$0xff]
  %v19 = vld [vmem:[%s1 + $0x20] sm:$0xff]
  %v20 = vld [vmem:[%s1 + $0x28] sm:$0xff]
  %v21 = vld [vmem:[%s1 + $0x30] sm:$0xff]
  %v22 = vld [vmem:[%s1 + $0x38] sm:$0xff]
  %v23 = vld [vmem:[%s1 + $0x40] sm:$0xff]
  %v24 = vld [vmem:[%s1 + $0x48] sm:$0xff]
  %v25 = vld [vmem:[%s1 + $0x50] sm:$0xff]
  %v26 = vld [vmem:[%s1 + $0x58] sm:$0xff]
  %v27 = vld [vmem:[%s1 + $0x60] sm:$0xf]
  %v28 = vld [vmem:[%s2] sm:$0x1]
  %v30 = vperm.slane %v28, 0
  %vm32 = vcmask 818176
  %v34 = vsel %vm32, %v14, 0
  %vm36 = vcmask 1043456
  %v38 = vsel %vm36, %v27, 0
  %40 = vmatpush.msra.mxu0 0.0
  %41 = vmatpush.msra.mxu0 0.0
  %42 = vmatpush.msra.mxu0 0.0
  %43 = vmatpush.msra.mxu0 %v38
  %44 = vmatpush.msra.mxu0 %v26
  %45 = vmatpush.msra.mxu0 %v25
  %46 = vmatpush.msra.mxu0 %v24
  %47 = vmatpush.msra.mxu0 %v23
  %48 = vmatpush.msra.mxu0 %v22
  %49 = vmatpush.msra.mxu0 %v21
  %50 = vmatpush.msra.mxu0 %v20
  %51 = vmatpush.msra.mxu0 %v19
  %52 = vmatpush.msra.mxu0 %v18
  %53 = vmatpush.msra.mxu0 %v17
  %54 = vmatpush.msra.mxu0 %v16
  %55 = vmatpush.msra.mxu0 %v15
  %56 = vmatmul.f32.gmra.mxu0 %v34
  %v57 = vpop.f32.mrf.mxu0
  %v58 = vadd.f32 %v30, %v57
  %59 = vdwg.mxu0
  %vm60 = vcmask 15360
  %61 = vst.msk [vmem:[%s3] sm:$0xff] %vm60, %v58
  // Predicated region
  $region14: #{tpu_custom_call.1} parent=0 // pred_check
    _
  $region15: #{tpu_custom_call.1} parent=0 // pred_check_branch
    %63 = sbr.rel (0) target = $region17
  $region16: #{tpu_custom_call.1} parent=0 // pred_region
    _
  $region17: #{tpu_custom_call.1} parent=0 // pred_fallthru
    _
  // Predicated region
  $region18: #{tpu_custom_call.1} parent=0 // pred_check
    _
  $region19: #{tpu_custom_call.1} parent=0 // pred_check_branch
    %65 = sbr.rel (0) target = $region21
  $region20: #{tpu_custom_call.1} parent=0 // pred_region
    _
  $region21: #{tpu_custom_call.1} parent=0 // pred_fallthru
    _

</llo_original>
